<compile_context>
chip_gen: v5e
topology: v5e:2x2
jax: 0.10.0
libtpu: 0.0.40
codegen_flags: <defaults>
</compile_context>

<pallas_src>
import functools
import math

import jax
import jax.numpy as jnp
from jax.experimental import pallas as pl
from jax.experimental.pallas import tpu as pltpu

# Small shapes consistent with the module defaults.
EMBED_DIM = 32
KEY_DIM = EMBED_DIM          # k_dim=None -> embedding_dim
NUM_HEADS = 4
SEQ_LEN = 8
BATCH = 16


# ----------------------------------------------------------------------------
# Fused MHA kernel: projections + all-head attention + head-mean of probs.
# ----------------------------------------------------------------------------
def _mha_kernel(q_ref, kf_ref, vf_ref, wq_ref, bq_ref, wk_ref, bk_ref,
                wv_ref, bv_ref, hsum_ref, hexp_ref, out_ref, attn_ref,
                *, num_heads, seq_len, scale):
    bt = q_ref.shape[0]                      # rows in this batch block
    l = seq_len
    dk_tot = wq_ref.shape[1]
    e_out = wv_ref.shape[1]
    f32 = jnp.float32

    # ---- fused projections on the MXU (weights are [in, out], bias [1, out]).
    # 1/sqrt(dk) is folded into the projected query (one [bt, Dk] multiply).
    qp = (jnp.dot(q_ref[...], wq_ref[...], preferred_element_type=f32)
          + bq_ref[...]) * scale                                     # [bt, Dk]
    kp = (jnp.dot(kf_ref[...], wk_ref[...], preferred_element_type=f32)
          + bk_ref[...])                                             # [bt*L, Dk]
    vp = (jnp.dot(vf_ref[...], wv_ref[...], preferred_element_type=f32)
          + bv_ref[...])                                             # [bt*L, E]

    # Split rows back into (bt, L): L == 8 -> whole sublane groups, no relayout.
    kp3 = kp.reshape(bt, l, dk_tot)
    vp3 = vp.reshape(bt, l, e_out)

    # ---- scores for ALL heads at once.
    # Lane-dense elementwise product (VPU), then per-head dk-segment reduction
    # as a matmul against the [Dk, H] block-indicator (idle MXU, not XLU).
    prod = qp[:, None, :] * kp3                                      # [bt, L, Dk]
    s = jnp.dot(prod.reshape(bt * l, dk_tot), hsum_ref[...],
                preferred_element_type=f32).reshape(bt, l, num_heads)  # [bt, L, H]

    # ---- softmax over L (sublane reductions), all heads together.
    m = jnp.max(s, axis=1, keepdims=True)                            # [bt, 1, H]
    ex = jnp.exp(s - m)                                              # EUP
    denom = jnp.sum(ex, axis=1, keepdims=True)                       # [bt, 1, H]
    p = ex * pl.reciprocal(denom)        # exact reciprocal (EUP), probs sum to 1

    # ---- attention output for all heads in one shot.
    # Broadcast each head's prob across its dv lanes via the [H, E] indicator
    # matmul, multiply by the full vp, one sum over L -> single 32-lane store.
    p_wide = jnp.dot(p.reshape(bt * l, num_heads), hexp_ref[...],
                     preferred_element_type=f32).reshape(bt, l, e_out)
    out_ref[...] = jnp.sum(p_wide * vp3, axis=1).astype(out_ref.dtype)   # [bt, E]

    # Per-head mean of the attention probabilities (single store).
    attn_ref[...] = (jnp.sum(p, axis=-1) * (1.0 / num_heads)).astype(attn_ref.dtype)


# ----------------------------------------------------------------------------
# Wrapper
# ----------------------------------------------------------------------------
def _round_up(x, m):
    return (x + m - 1) // m * m


def _choose_block_b(b):
    """Row-block heuristic.

    * >= 2 grid steps whenever possible so v7x's two TensorCores both get work
      via dimension_semantics=("parallel",); near-zero cost on v5e/v6e.
    * Cap at 512 rows: with 128-lane padding, double-buffered q/k/v/out blocks
      plus in-kernel kp/vp/prod/p intermediates cost ~50 KB per row worst case
      (~25 MB at 512 rows), which fits the explicit 32 MiB vmem_limit on every
      generation (v5e default is only 16 MiB; v7x physical is 64 MiB).
    """
    bp8 = _round_up(b, 8)
    if bp8 <= 8:
        return bp8
    return min(_round_up(pl.cdiv(bp8, 2), 8), 512)


@functools.partial(jax.jit, static_argnames=("num_heads",))
def mha_forward(params, q, k, v, *, num_heads=NUM_HEADS):
    """MHA.forward: (result [B, E], mean attention weights [B, L])."""
    if q.ndim == 3:                          # accept [B, 1, E] or [B, E]
        q = q.reshape(q.shape[0], -1)
    b, e_q = q.shape
    _, l, dk_in = k.shape
    e_v = v.shape[2]
    dk_tot = params["w_q"].shape[1]
    dk = dk_tot // num_heads
    dv = e_v // num_heads
    scale = 1.0 / math.sqrt(dk)

    block_b = _choose_block_b(b)
    bp = _round_up(b, block_b)
    if bp != b:
        q = jnp.pad(q, ((0, bp - b), (0, 0)))
        k = jnp.pad(k, ((0, bp - b), (0, 0), (0, 0)))
        v = jnp.pad(v, ((0, bp - b), (0, 0), (0, 0)))

    # Pre-flatten k/v (free contiguous reshape) -> flat 2-D DMAs into the kernel.
    kf = k.reshape(bp * l, dk_in)
    vf = v.reshape(bp * l, e_v)

    # Tiny block-indicator constants (constant-folded by XLA, resident in VMEM):
    #   head_sum[d, h] = 1 iff d // dk == h     -> per-head score reduction
    #   head_exp[h, j] = 1 iff j // dv == h     -> prob broadcast across dv lanes
    eye = jnp.eye(num_heads, dtype=jnp.float32)
    head_sum = jnp.repeat(eye, dk, axis=0)                 # [Dk, H]
    head_exp = jnp.repeat(eye, dv, axis=1)                 # [H, E]

    kernel = functools.partial(_mha_kernel, num_heads=num_heads,
                               seq_len=l, scale=scale)
    out, attn = pl.pallas_call(
        kernel,
        out_shape=(jax.ShapeDtypeStruct((bp, e_v), jnp.float32),
                   jax.ShapeDtypeStruct((bp, l), jnp.float32)),
        grid=(bp // block_b,),
        in_specs=[
            pl.BlockSpec((block_b, e_q), lambda i: (i, 0)),          # q
            pl.BlockSpec((block_b * l, dk_in), lambda i: (i, 0)),    # k (flat)
            pl.BlockSpec((block_b * l, e_v), lambda i: (i, 0)),      # v (flat)
            pl.BlockSpec((e_q, dk_tot), lambda i: (0, 0)),           # w_q (resident)
            pl.BlockSpec((1, dk_tot), lambda i: (0, 0)),             # b_q
            pl.BlockSpec((dk_in, dk_tot), lambda i: (0, 0)),         # w_k
            pl.BlockSpec((1, dk_tot), lambda i: (0, 0)),             # b_k
            pl.BlockSpec((e_v, e_v), lambda i: (0, 0)),              # w_v
            pl.BlockSpec((1, e_v), lambda i: (0, 0)),                # b_v
            pl.BlockSpec((dk_tot, num_heads), lambda i: (0, 0)),     # head_sum
            pl.BlockSpec((num_heads, e_v), lambda i: (0, 0)),        # head_exp
        ],
        out_specs=(pl.BlockSpec((block_b, e_v), lambda i: (i, 0)),
                   pl.BlockSpec((block_b, l), lambda i: (i, 0))),
        compiler_params=pltpu.CompilerParams(
            dimension_semantics=("parallel",),
            vmem_limit_bytes=32 * 1024 * 1024),
    )(q, kf, vf, params["w_q"], params["b_q"], params["w_k"], params["b_k"],
      params["w_v"], params["b_v"], head_sum, head_exp)
    return out[:b], attn[:b]


# ----------------------------------------------------------------------------
# Pure-JAX reference (torch semantics) for a correctness self-check.
# ----------------------------------------------------------------------------
def mha_reference(params, q, k, v, num_heads):
    qp = q @ params["w_q"] + params["b_q"]
    kp = k @ params["w_k"] + params["b_k"]
    vp = v @ params["w_v"] + params["b_v"]
    b, l, _ = k.shape
    dk_tot = qp.shape[-1]
    e = vp.shape[-1]
    dk, dv = dk_tot // num_heads, e // num_heads
    qh = qp.reshape(b, 1, num_heads, dk).transpose(0, 2, 1, 3)
    kh = kp.reshape(b, l, num_heads, dk).transpose(0, 2, 1, 3)
    vh = vp.reshape(b, l, num_heads, dv).transpose(0, 2, 1, 3)
    s = jnp.einsum("bhqd,bhkd->bhqk", qh, kh) / math.sqrt(dk)
    p = jax.nn.softmax(s, axis=-1)                       # [b, h, 1, l]
    r = jnp.einsum("bhqk,bhkd->bhqd", p, vh)             # [b, h, 1, dv]
    result = r.reshape(b, num_heads * dv)                # == .view(B, -1)
    attn_mean = p[:, :, 0, :].mean(axis=1)               # mean over heads
    return result, attn_mean


# ----------------------------------------------------------------------------
# Deterministic params (weights stored pre-transposed: [in, out]).
# ----------------------------------------------------------------------------
def init_params(key, embed_dim=EMBED_DIM, k_dim=KEY_DIM):
    ks = jax.random.split(key, 6)
    s = 0.5
    return {
        "w_q": s * jax.random.normal(ks[0], (embed_dim, k_dim), jnp.float32),
        "b_q": s * jax.random.normal(ks[1], (1, k_dim), jnp.float32),
        "w_k": s * jax.random.normal(ks[2], (k_dim, k_dim), jnp.float32),
        "b_k": s * jax.random.normal(ks[3], (1, k_dim), jnp.float32),
        "w_v": s * jax.random.normal(ks[4], (embed_dim, embed_dim), jnp.float32),
        "b_v": s * jax.random.normal(ks[5], (1, embed_dim), jnp.float32),
    }


# ----------------------------------------------------------------------------
if __name__ == "__main__":
    key = jax.random.PRNGKey(0)
    pk, qk, kk, vk = jax.random.split(key, 4)
    params = init_params(pk)

    q = jax.random.normal(qk, (BATCH, EMBED_DIM), jnp.float32)          # single query / row
    k = jax.random.normal(kk, (BATCH, SEQ_LEN, KEY_DIM), jnp.float32)
    v = jax.random.normal(vk, (BATCH, SEQ_LEN, EMBED_DIM), jnp.float32)

    out, attn = mha_forward(params, q, k, v, num_heads=NUM_HEADS)
    jax.block_until_ready((out, attn))

    assert out.shape == (BATCH, EMBED_DIM)
    assert attn.shape == (BATCH, SEQ_LEN)
    assert jnp.isfinite(out).all() and jnp.isfinite(attn).all()

    ref_out, ref_attn = mha_reference(params, q, k, v, NUM_HEADS)
    assert jnp.allclose(out, ref_out, rtol=5e-3, atol=5e-3)
    assert jnp.allclose(attn, ref_attn, rtol=5e-3, atol=5e-3)

    print("KERNEL_OK")
</pallas_src>

<mosaic_0001>
module attributes {stable_mosaic.version = 11 : i64} {
  func.func @_mha_kernel(%arg0: i32, %arg1: memref<8x32xf32, #tpu.memory_space<vmem>>, %arg2: memref<64x32xf32, #tpu.memory_space<vmem>>, %arg3: memref<64x32xf32, #tpu.memory_space<vmem>>, %arg4: memref<32x32xf32, #tpu.memory_space<vmem>>, %arg5: memref<1x32xf32, #tpu.memory_space<vmem>>, %arg6: memref<32x32xf32, #tpu.memory_space<vmem>>, %arg7: memref<1x32xf32, #tpu.memory_space<vmem>>, %arg8: memref<32x32xf32, #tpu.memory_space<vmem>>, %arg9: memref<1x32xf32, #tpu.memory_space<vmem>>, %arg10: memref<32x4xf32, #tpu.memory_space<vmem>>, %arg11: memref<4x32xf32, #tpu.memory_space<vmem>>, %arg12: memref<8x32xf32, #tpu.memory_space<vmem>>, %arg13: memref<8x8xf32, #tpu.memory_space<vmem>>) attributes {dimension_semantics = [#tpu.dimension_semantics<parallel>], iteration_bounds = array<i64: 2>, scalar_prefetch = 0 : i64, scratch_operands = 0 : i64, tpu.core_type = #tpu.core_type<tc>, window_params = [{transform_indices = @transform_0, window_bounds = array<i64: 8, 32>}, {transform_indices = @transform_1, window_bounds = array<i64: 64, 32>}, {transform_indices = @transform_2, window_bounds = array<i64: 64, 32>}, {pipeline_mode = #tpu.pipeline_mode<synchronous>, transform_indices = @transform_3, window_bounds = array<i64: 32, 32>}, {pipeline_mode = #tpu.pipeline_mode<synchronous>, transform_indices = @transform_4, window_bounds = array<i64: 1, 32>}, {pipeline_mode = #tpu.pipeline_mode<synchronous>, transform_indices = @transform_5, window_bounds = array<i64: 32, 32>}, {pipeline_mode = #tpu.pipeline_mode<synchronous>, transform_indices = @transform_6, window_bounds = array<i64: 1, 32>}, {pipeline_mode = #tpu.pipeline_mode<synchronous>, transform_indices = @transform_7, window_bounds = array<i64: 32, 32>}, {pipeline_mode = #tpu.pipeline_mode<synchronous>, transform_indices = @transform_8, window_bounds = array<i64: 1, 32>}, {pipeline_mode = #tpu.pipeline_mode<synchronous>, transform_indices = @transform_9, window_bounds = array<i64: 32, 4>}, {pipeline_mode = #tpu.pipeline_mode<synchronous>, transform_indices = @transform_10, window_bounds = array<i64: 4, 32>}, {transform_indices = @transform_11, window_bounds = array<i64: 8, 32>}, {transform_indices = @transform_12, window_bounds = array<i64: 8, 8>}]} {
    %c0 = arith.constant 0 : index
    %c0_0 = arith.constant 0 : index
    %0 = vector.load %arg1[%c0, %c0_0] : memref<8x32xf32, #tpu.memory_space<vmem>>, vector<8x32xf32>
    %c0_1 = arith.constant 0 : index
    %c0_2 = arith.constant 0 : index
    %1 = vector.load %arg4[%c0_1, %c0_2] : memref<32x32xf32, #tpu.memory_space<vmem>>, vector<32x32xf32>
    %cst = arith.constant dense<0.000000e+00> : vector<8x32xf32>
    %2 = tpu.matmul %0, %1, %cst {dimension_numbers = #tpu.dot_dimension_numbers<[1], [0], [0], [1], [0, 0, 1, 1], [], []>} : vector<8x32xf32>, vector<32x32xf32>, vector<8x32xf32> -> vector<8x32xf32>
    %c0_3 = arith.constant 0 : index
    %c0_4 = arith.constant 0 : index
    %3 = vector.load %arg5[%c0_3, %c0_4] : memref<1x32xf32, #tpu.memory_space<vmem>>, vector<1x32xf32>
    %4 = vector.broadcast %3 : vector<1x32xf32> to vector<8x32xf32>
    %5 = arith.addf %2, %4 : vector<8x32xf32>
    %cst_5 = arith.constant 0.353553385 : f32
    %6 = vector.broadcast %cst_5 : f32 to vector<8x32xf32>
    %7 = arith.mulf %5, %6 : vector<8x32xf32>
    %c0_6 = arith.constant 0 : index
    %c0_7 = arith.constant 0 : index
    %8 = vector.load %arg2[%c0_6, %c0_7] : memref<64x32xf32, #tpu.memory_space<vmem>>, vector<64x32xf32>
    %c0_8 = arith.constant 0 : index
    %c0_9 = arith.constant 0 : index
    %9 = vector.load %arg6[%c0_8, %c0_9] : memref<32x32xf32, #tpu.memory_space<vmem>>, vector<32x32xf32>
    %cst_10 = arith.constant dense<0.000000e+00> : vector<64x32xf32>
    %10 = tpu.matmul %8, %9, %cst_10 {dimension_numbers = #tpu.dot_dimension_numbers<[1], [0], [0], [1], [0, 0, 1, 1], [], []>} : vector<64x32xf32>, vector<32x32xf32>, vector<64x32xf32> -> vector<64x32xf32>
    %c0_11 = arith.constant 0 : index
    %c0_12 = arith.constant 0 : index
    %11 = vector.load %arg7[%c0_11, %c0_12] : memref<1x32xf32, #tpu.memory_space<vmem>>, vector<1x32xf32>
    %12 = vector.broadcast %11 : vector<1x32xf32> to vector<64x32xf32>
    %13 = arith.addf %10, %12 : vector<64x32xf32>
    %c0_13 = arith.constant 0 : index
    %c0_14 = arith.constant 0 : index
    %14 = vector.load %arg3[%c0_13, %c0_14] : memref<64x32xf32, #tpu.memory_space<vmem>>, vector<64x32xf32>
    %c0_15 = arith.constant 0 : index
    %c0_16 = arith.constant 0 : index
    %15 = vector.load %arg8[%c0_15, %c0_16] : memref<32x32xf32, #tpu.memory_space<vmem>>, vector<32x32xf32>
    %cst_17 = arith.constant dense<0.000000e+00> : vector<64x32xf32>
    %16 = tpu.matmul %14, %15, %cst_17 {dimension_numbers = #tpu.dot_dimension_numbers<[1], [0], [0], [1], [0, 0, 1, 1], [], []>} : vector<64x32xf32>, vector<32x32xf32>, vector<64x32xf32> -> vector<64x32xf32>
    %c0_18 = arith.constant 0 : index
    %c0_19 = arith.constant 0 : index
    %17 = vector.load %arg9[%c0_18, %c0_19] : memref<1x32xf32, #tpu.memory_space<vmem>>, vector<1x32xf32>
    %18 = vector.broadcast %17 : vector<1x32xf32> to vector<64x32xf32>
    %19 = arith.addf %16, %18 : vector<64x32xf32>
    %20 = vector.shape_cast %13 : vector<64x32xf32> to vector<8x8x32xf32>
    %21 = vector.shape_cast %19 : vector<64x32xf32> to vector<8x8x32xf32>
    %22 = vector.shape_cast %7 : vector<8x32xf32> to vector<8x1x32xf32>
    %23 = vector.broadcast %22 : vector<8x1x32xf32> to vector<8x8x32xf32>
    %24 = arith.mulf %23, %20 : vector<8x8x32xf32>
    %25 = vector.shape_cast %24 : vector<8x8x32xf32> to vector<64x32xf32>
    %c0_20 = arith.constant 0 : index
    %c0_21 = arith.constant 0 : index
    %26 = vector.load %arg10[%c0_20, %c0_21] : memref<32x4xf32, #tpu.memory_space<vmem>>, vector<32x4xf32>
    %cst_22 = arith.constant dense<0.000000e+00> : vector<64x4xf32>
    %27 = tpu.matmul %25, %26, %cst_22 {dimension_numbers = #tpu.dot_dimension_numbers<[1], [0], [0], [1], [0, 0, 1, 1], [], []>} : vector<64x32xf32>, vector<32x4xf32>, vector<64x4xf32> -> vector<64x4xf32>
    %28 = vector.shape_cast %27 : vector<64x4xf32> to vector<8x8x4xf32>
    %cst_23 = arith.constant dense<0xFF800000> : vector<8x4xf32>
    %29 = vector.multi_reduction <maximumf>, %28, %cst_23 [1] : vector<8x8x4xf32> to vector<8x4xf32>
    %30 = vector.shape_cast %29 : vector<8x4xf32> to vector<8x1x4xf32>
    %31 = vector.broadcast %30 : vector<8x1x4xf32> to vector<8x8x4xf32>
    %32 = arith.subf %28, %31 : vector<8x8x4xf32>
    %33 = math.exp %32 : vector<8x8x4xf32>
    %cst_24 = arith.constant dense<0.000000e+00> : vector<8x4xf32>
    %34 = vector.multi_reduction <add>, %33, %cst_24 [1] : vector<8x8x4xf32> to vector<8x4xf32>
    %35 = vector.shape_cast %34 : vector<8x4xf32> to vector<8x1x4xf32>
    %36 = tpu.reciprocal %35 : vector<8x1x4xf32> -> vector<8x1x4xf32>
    %37 = vector.broadcast %36 : vector<8x1x4xf32> to vector<8x8x4xf32>
    %38 = arith.mulf %33, %37 : vector<8x8x4xf32>
    %39 = vector.shape_cast %38 : vector<8x8x4xf32> to vector<64x4xf32>
    %c0_25 = arith.constant 0 : index
    %c0_26 = arith.constant 0 : index
    %40 = vector.load %arg11[%c0_25, %c0_26] : memref<4x32xf32, #tpu.memory_space<vmem>>, vector<4x32xf32>
    %cst_27 = arith.constant dense<0.000000e+00> : vector<64x32xf32>
    %41 = tpu.matmul %39, %40, %cst_27 {dimension_numbers = #tpu.dot_dimension_numbers<[1], [0], [0], [1], [0, 0, 1, 1], [], []>} : vector<64x4xf32>, vector<4x32xf32>, vector<64x32xf32> -> vector<64x32xf32>
    %42 = vector.shape_cast %41 : vector<64x32xf32> to vector<8x8x32xf32>
    %43 = arith.mulf %42, %21 : vector<8x8x32xf32>
    %cst_28 = arith.constant dense<0.000000e+00> : vector<8x32xf32>
    %44 = vector.multi_reduction <add>, %43, %cst_28 [1] : vector<8x8x32xf32> to vector<8x32xf32>
    %c0_29 = arith.constant 0 : index
    %c0_30 = arith.constant 0 : index
    %45 = vector.load %arg12[%c0_29, %c0_30] : memref<8x32xf32, #tpu.memory_space<vmem>>, vector<8x32xf32>
    tpu.vector_store %arg12[%c0_29, %c0_30], %44 {strides = array<i32>} : memref<8x32xf32, #tpu.memory_space<vmem>>, vector<8x32xf32>,
    %cst_31 = arith.constant dense<0.000000e+00> : vector<8x8xf32>
    %46 = vector.multi_reduction <add>, %38, %cst_31 [2] : vector<8x8x4xf32> to vector<8x8xf32>
    %cst_32 = arith.constant 2.500000e-01 : f32
    %47 = vector.broadcast %cst_32 : f32 to vector<8x8xf32>
    %48 = arith.mulf %46, %47 : vector<8x8xf32>
    %c0_33 = arith.constant 0 : index
    %c0_34 = arith.constant 0 : index
    %49 = vector.load %arg13[%c0_33, %c0_34] : memref<8x8xf32, #tpu.memory_space<vmem>>, vector<8x8xf32>
    tpu.vector_store %arg13[%c0_33, %c0_34], %48 {strides = array<i32>} : memref<8x8xf32, #tpu.memory_space<vmem>>, vector<8x8xf32>,
    return
  }
  func.func @transform_0(%arg0: i32) -> (i32, i32) {
    %c0_i32 = arith.constant 0 : i32
    %c0_i32_0 = arith.constant 0 : i32
    return %arg0, %c0_i32 : i32, i32
  }
  func.func @transform_1(%arg0: i32) -> (i32, i32) {
    %c0_i32 = arith.constant 0 : i32
    %c0_i32_0 = arith.constant 0 : i32
    return %arg0, %c0_i32 : i32, i32
  }
  func.func @transform_2(%arg0: i32) -> (i32, i32) {
    %c0_i32 = arith.constant 0 : i32
    %c0_i32_0 = arith.constant 0 : i32
    return %arg0, %c0_i32 : i32, i32
  }
  func.func @transform_3(%arg0: i32) -> (i32, i32) {
    %c0_i32 = arith.constant 0 : i32
    %c0_i32_0 = arith.constant 0 : i32
    %c0_i32_1 = arith.constant 0 : i32
    return %c0_i32, %c0_i32_0 : i32, i32
  }
  func.func @transform_4(%arg0: i32) -> (i32, i32) {
    %c0_i32 = arith.constant 0 : i32
    %c0_i32_0 = arith.constant 0 : i32
    %c0_i32_1 = arith.constant 0 : i32
    return %c0_i32, %c0_i32_0 : i32, i32
  }
  func.func @transform_5(%arg0: i32) -> (i32, i32) {
    %c0_i32 = arith.constant 0 : i32
    %c0_i32_0 = arith.constant 0 : i32
    %c0_i32_1 = arith.constant 0 : i32
    return %c0_i32, %c0_i32_0 : i32, i32
  }
  func.func @transform_6(%arg0: i32) -> (i32, i32) {
    %c0_i32 = arith.constant 0 : i32
    %c0_i32_0 = arith.constant 0 : i32
    %c0_i32_1 = arith.constant 0 : i32
    return %c0_i32, %c0_i32_0 : i32, i32
  }
  func.func @transform_7(%arg0: i32) -> (i32, i32) {
    %c0_i32 = arith.constant 0 : i32
    %c0_i32_0 = arith.constant 0 : i32
    %c0_i32_1 = arith.constant 0 : i32
    return %c0_i32, %c0_i32_0 : i32, i32
  }
  func.func @transform_8(%arg0: i32) -> (i32, i32) {
    %c0_i32 = arith.constant 0 : i32
    %c0_i32_0 = arith.constant 0 : i32
    %c0_i32_1 = arith.constant 0 : i32
    return %c0_i32, %c0_i32_0 : i32, i32
  }
  func.func @transform_9(%arg0: i32) -> (i32, i32) {
    %c0_i32 = arith.constant 0 : i32
    %c0_i32_0 = arith.constant 0 : i32
    %c0_i32_1 = arith.constant 0 : i32
    return %c0_i32, %c0_i32_0 : i32, i32
  }
  func.func @transform_10(%arg0: i32) -> (i32, i32) {
    %c0_i32 = arith.constant 0 : i32
    %c0_i32_0 = arith.constant 0 : i32
    %c0_i32_1 = arith.constant 0 : i32
    return %c0_i32, %c0_i32_0 : i32, i32
  }
  func.func @transform_11(%arg0: i32) -> (i32, i32) {
    %c0_i32 = arith.constant 0 : i32
    %c0_i32_0 = arith.constant 0 : i32
    return %arg0, %c0_i32 : i32, i32
  }
  func.func @transform_12(%arg0: i32) -> (i32, i32) {
    %c0_i32 = arith.constant 0 : i32
    %c0_i32_0 = arith.constant 0 : i32
    return %arg0, %c0_i32 : i32, i32
  }
}

</mosaic_0001>

<llo_original>
// kernel: mha_forward.1
$region0: #{mha_forward.1}
  #allocation0 [shape = 'u32[]', space=smem, size = 0x4, offset = 0x4, fixed_abs, tag = 'smem constant byte address 0x4 - core index']
  #allocation1 [shape = 'u32[72,128]{1,0:T(1,128)}', space=vmem, size = 0x9000, scoped, tag = 'internal scratch']
  %s0 = inlined_call_operand.vmem [shape: f32[16,32], index: 0, kind: input, shape index: {}]
  %s1 = inlined_call_operand.hbm [shape: f32[128,32], index: 1, kind: input, shape index: {}]
  %s2 = inlined_call_operand.hbm [shape: f32[128,32], index: 2, kind: input, shape index: {}]
  %s3 = inlined_call_operand.vmem [shape: f32[32,32], index: 3, kind: input, shape index: {}]
  %s4 = inlined_call_operand.vmem [shape: f32[1,32], index: 4, kind: input, shape index: {}]
  %s5 = inlined_call_operand.vmem [shape: f32[32,32], index: 5, kind: input, shape index: {}]
  %s6 = inlined_call_operand.hbm [shape: f32[1,32], index: 6, kind: input, shape index: {}]
  %s7 = inlined_call_operand.hbm [shape: f32[32,32], index: 7, kind: input, shape index: {}]
  %s8 = inlined_call_operand.vmem [shape: f32[1,32], index: 8, kind: input, shape index: {}]
  %s9 = inlined_call_operand.vmem [shape: f32[32,4], index: 9, kind: input, shape index: {}]
  %s10 = inlined_call_operand.vmem [shape: f32[4,32], index: 10, kind: input, shape index: {}]
  %s11 = inlined_call_operand.hbm [shape: f32[16,32], index: 11, kind: output, shape index: {0}]
  %s12 = inlined_call_operand.vmem [shape: f32[16,8], index: 12, kind: output, shape index: {1}]
  %13 = xla_tuple %s11, %s12
  %s14 = sld [smem:[#allocation0]]
  $region101: #{mha_forward.1} parent=0
    _
  %s16 = ssub.s32 1, %s14
  %s17 = scalar_select 0, %s16, %s14
  $region1: #{mha_forward.1} parent=0
    #allocation2 [shape = 'u8[65536]{0}', space=vmem, size = 0x10000, scoped, tag = 'input window, operand 1']
    #allocation3 [shape = 's32[2]{0}', space=sflag, size = 0x8, scoped, tag = 'scoped memory for mha_forward.1']
    #allocation4 [shape = 's32[2]{0}', space=sflag, size = 0x8, scoped, tag = 'scoped memory for mha_forward.1']
    #allocation5 [shape = 'u8[65536]{0}', space=vmem, size = 0x10000, scoped, tag = 'input window, operand 2']
    #allocation6 [shape = 's32[2]{0}', space=sflag, size = 0x8, scoped, tag = 'scoped memory for mha_forward.1']
    #allocation7 [shape = 'u8[512]{0}', space=vmem, size = 0x400, scoped, tag = 'input window, operand 6, single buffered']
    #allocation8 [shape = 'u8[16384]{0}', space=vmem, size = 0x4000, scoped, tag = 'input window, operand 7, single buffered']
    #allocation9 [shape = 's32[1]{0}', space=sflag, size = 0x4, scoped, tag = 'scoped memory for mha_forward.1']
    #allocation10 [shape = 'u8[8192]{0}', space=vmem, size = 0x2000, scoped, tag = 'output window, operand 0']
    %18 = vsyncpa [#allocation3], 0
    %s19 = scalar_lea.sflag [#allocation3], 1
    %20 = vsyncpa %s19, 0
    %21 = vsyncpa [#allocation6], 0
    %s22 = scalar_lea.sflag [#allocation6], 1
    %23 = vsyncpa %s22, 0
    %24 = vsyncpa [#allocation9], 0
    %25 = vsyncpa [#allocation4], 0
    %s26 = scalar_lea.sflag [#allocation4], 1
    %27 = vsyncpa %s26, 0
    loop: start=0, step=1, limit=4
    $region2: #{mha_forward.1} parent=1 // loop_pre_header
      _
    $region3: #{mha_forward.1} parent=1 // loop_header
      %s29 = sphi 0, %s33
      %p30 = scmp.ge.s32.totalorder %s29, 4
      %s39 = sphi 0, %s41
      %s42 = sphi 0, %s39
      %s43 = sphi 0, %s42
      %s59 = sphi 0, %s43
      %s65 = sphi 0, %s67
      %s68 = sphi 0, %s65
      %s69 = sphi 0, %s68
      %s85 = sphi 0, %s69
      %s91 = sphi 0, %s93
      %s94 = sphi 0, %s91
      %s95 = sphi 0, %s94
      %s111 = sphi 0, %s95
      %s115 = sphi 0, %s115
      %s117 = sphi 0, %s115
      %s118 = sphi 0, %s117
      %s132 = sphi 0, %s118
      %s136 = sphi 0, %s136
      %s138 = sphi 0, %s136
      %s139 = sphi 0, %s138
      %s153 = sphi 0, %s139
      %s157 = sphi 0, %s157
      %s159 = sphi 0, %s157
      %s160 = sphi 0, %s159
      %s174 = sphi 0, %s160
      %s178 = sphi 0, %s178
      %s180 = sphi 0, %s178
      %s181 = sphi 0, %s180
      %s195 = sphi 0, %s181
      %s199 = sphi 0, %s199
      %s201 = sphi 0, %s199
      %s202 = sphi 0, %s201
      %s216 = sphi 0, %s202
      %s220 = sphi 0, %s220
      %s222 = sphi 0, %s220
      %s223 = sphi 0, %s222
      %s237 = sphi 0, %s223
      %s241 = sphi 0, %s241
      %s243 = sphi 0, %s241
      %s244 = sphi 0, %s243
      %s258 = sphi 0, %s244
      %s262 = sphi 0, %s262
      %s264 = sphi 0, %s262
      %s265 = sphi 0, %s264
      %s279 = sphi 0, %s265
      %s285 = sphi 0, %s287
      %s288 = sphi 0, %s285
      %s289 = sphi 0, %s288
      %s305 = sphi 0, %s289
      %s311 = sphi 0, %s313
      %s314 = sphi 0, %s311
      %s315 = sphi 0, %s314
      %s331 = sphi 0, %s315
    $region4: #{mha_forward.1} parent=1 // loop_header_branch
      %32 = sbr.rel (%p30) target = $region8
    $region5: #{mha_forward.1} parent=1 // loop_body
      %s34 = ssub.s32 %s29, 1
      %s35 = ssub.s32 %s29, 2
      %s36 = sadd.s32 %s29, 1
      %s37 = ssub.s32 %s29, %s36
      %p38 = scmp.eq.s32.totalorder %s37, 0
      %s40 = sadd.s32 %s39, 1
      %s41 = scalar_select %p38, %s39, %s40
      %p44 = pneg %p38
      %p45 = scmp.eq.s32.totalorder %s29, 1
      %p46 = por %p44, %p45
      %p47 = scmp.ne.s32.totalorder %s39, %s42
      %p48 = scmp.eq.s32.totalorder %s29, 0
      %p49 = por %p47, %p48
      %p50 = scmp.ne.s32.totalorder %s39, %s42
      %p51 = scmp.eq.s32.totalorder %s34, 1
      %p52 = por %p50, %p51
      %p53 = scmp.ne.s32.totalorder %s42, %s43
      %p54 = scmp.eq.s32.totalorder %s34, 0
      %p55 = por %p53, %p54
      %p56 = scmp.ne.s32.totalorder %s42, %s43
      %p57 = scmp.eq.s32.totalorder %s35, 1
      %p58 = por %p56, %p57
      %p60 = scmp.ne.s32.totalorder %s43, %s59
      %p61 = scmp.eq.s32.totalorder %s35, 0
      %p62 = por %p60, %p61
      %s63 = ssub.s32 %s29, %s36
      %p64 = scmp.eq.s32.totalorder %s63, 0
      %s66 = sadd.s32 %s65, 1
      %s67 = scalar_select %p64, %s65, %s66
      %p70 = pneg %p64
      %p71 = scmp.eq.s32.totalorder %s29, 1
      %p72 = por %p70, %p71
      %p73 = scmp.ne.s32.totalorder %s65, %s68
      %p74 = scmp.eq.s32.totalorder %s29, 0
      %p75 = por %p73, %p74
      %p76 = scmp.ne.s32.totalorder %s65, %s68
      %p77 = scmp.eq.s32.totalorder %s34, 1
      %p78 = por %p76, %p77
      %p79 = scmp.ne.s32.totalorder %s68, %s69
      %p80 = scmp.eq.s32.totalorder %s34, 0
      %p81 = por %p79, %p80
      %p82 = scmp.ne.s32.totalorder %s68, %s69
      %p83 = scmp.eq.s32.totalorder %s35, 1
      %p84 = por %p82, %p83
      %p86 = scmp.ne.s32.totalorder %s69, %s85
      %p87 = scmp.eq.s32.totalorder %s35, 0
      %p88 = por %p86, %p87
      %s89 = ssub.s32 %s29, %s36
      %p90 = scmp.eq.s32.totalorder %s89, 0
      %s92 = sadd.s32 %s91, 1
      %s93 = scalar_select %p90, %s91, %s92
      %p96 = pneg %p90
      %p97 = scmp.eq.s32.totalorder %s29, 1
      %p98 = por %p96, %p97
      %p99 = scmp.ne.s32.totalorder %s91, %s94
      %p100 = scmp.eq.s32.totalorder %s29, 0
      %p101 = por %p99, %p100
      %p102 = scmp.ne.s32.totalorder %s91, %s94
      %p103 = scmp.eq.s32.totalorder %s34, 1
      %p104 = por %p102, %p103
      %p105 = scmp.ne.s32.totalorder %s94, %s95
      %p106 = scmp.eq.s32.totalorder %s34, 0
      %p107 = por %p105, %p106
      %p108 = scmp.ne.s32.totalorder %s94, %s95
      %p109 = scmp.eq.s32.totalorder %s35, 1
      %p110 = por %p108, %p109
      %p112 = scmp.ne.s32.totalorder %s95, %s111
      %p113 = scmp.eq.s32.totalorder %s35, 0
      %p114 = por %p112, %p113
      %s116 = sadd.s32 %s115, 1
      %p119 = scmp.eq.s32.totalorder %s29, 1
      %p120 = scmp.ne.s32.totalorder %s115, %s117
      %p121 = scmp.eq.s32.totalorder %s29, 0
      %p122 = por %p120, %p121
      %p123 = scmp.ne.s32.totalorder %s115, %s117
      %p124 = scmp.eq.s32.totalorder %s34, 1
      %p125 = por %p123, %p124
      %p126 = scmp.ne.s32.totalorder %s117, %s118
      %p127 = scmp.eq.s32.totalorder %s34, 0
      %p128 = por %p126, %p127
      %p129 = scmp.ne.s32.totalorder %s117, %s118
      %p130 = scmp.eq.s32.totalorder %s35, 1
      %p131 = por %p129, %p130
      %p133 = scmp.ne.s32.totalorder %s118, %s132
      %p134 = scmp.eq.s32.totalorder %s35, 0
      %p135 = por %p133, %p134
      %s137 = sadd.s32 %s136, 1
      %p140 = scmp.eq.s32.totalorder %s29, 1
      %p141 = scmp.ne.s32.totalorder %s136, %s138
      %p142 = scmp.eq.s32.totalorder %s29, 0
      %p143 = por %p141, %p142
      %p144 = scmp.ne.s32.totalorder %s136, %s138
      %p145 = scmp.eq.s32.totalorder %s34, 1
      %p146 = por %p144, %p145
      %p147 = scmp.ne.s32.totalorder %s138, %s139
      %p148 = scmp.eq.s32.totalorder %s34, 0
      %p149 = por %p147, %p148
      %p150 = scmp.ne.s32.totalorder %s138, %s139
      %p151 = scmp.eq.s32.totalorder %s35, 1
      %p152 = por %p150, %p151
      %p154 = scmp.ne.s32.totalorder %s139, %s153
      %p155 = scmp.eq.s32.totalorder %s35, 0
      %p156 = por %p154, %p155
      %s158 = sadd.s32 %s157, 1
      %p161 = scmp.eq.s32.totalorder %s29, 1
      %p162 = scmp.ne.s32.totalorder %s157, %s159
      %p163 = scmp.eq.s32.totalorder %s29, 0
      %p164 = por %p162, %p163
      %p165 = scmp.ne.s32.totalorder %s157, %s159
      %p166 = scmp.eq.s32.totalorder %s34, 1
      %p167 = por %p165, %p166
      %p168 = scmp.ne.s32.totalorder %s159, %s160
      %p169 = scmp.eq.s32.totalorder %s34, 0
      %p170 = por %p168, %p169
      %p171 = scmp.ne.s32.totalorder %s159, %s160
      %p172 = scmp.eq.s32.totalorder %s35, 1
      %p173 = por %p171, %p172
      %p175 = scmp.ne.s32.totalorder %s160, %s174
      %p176 = scmp.eq.s32.totalorder %s35, 0
      %p177 = por %p175, %p176
      %s179 = sadd.s32 %s178, 1
      %p182 = scmp.eq.s32.totalorder %s29, 1
      %p183 = scmp.ne.s32.totalorder %s178, %s180
      %p184 = scmp.eq.s32.totalorder %s29, 0
      %p185 = por %p183, %p184
      %p186 = scmp.ne.s32.totalorder %s178, %s180
      %p187 = scmp.eq.s32.totalorder %s34, 1
      %p188 = por %p186, %p187
      %p189 = scmp.ne.s32.totalorder %s180, %s181
      %p190 = scmp.eq.s32.totalorder %s34, 0
      %p191 = por %p189, %p190
      %p192 = scmp.ne.s32.totalorder %s180, %s181
      %p193 = scmp.eq.s32.totalorder %s35, 1
      %p194 = por %p192, %p193
      %p196 = scmp.ne.s32.totalorder %s181, %s195
      %p197 = scmp.eq.s32.totalorder %s35, 0
      %p198 = por %p196, %p197
      %s200 = sadd.s32 %s199, 1
      %p203 = scmp.eq.s32.totalorder %s29, 1
      %p204 = scmp.ne.s32.totalorder %s199, %s201
      %p205 = scmp.eq.s32.totalorder %s29, 0
      %p206 = por %p204, %p205
      %p207 = scmp.ne.s32.totalorder %s199, %s201
      %p208 = scmp.eq.s32.totalorder %s34, 1
      %p209 = por %p207, %p208
      %p210 = scmp.ne.s32.totalorder %s201, %s202
      %p211 = scmp.eq.s32.totalorder %s34, 0
      %p212 = por %p210, %p211
      %p213 = scmp.ne.s32.totalorder %s201, %s202
      %p214 = scmp.eq.s32.totalorder %s35, 1
      %p215 = por %p213, %p214
      %p217 = scmp.ne.s32.totalorder %s202, %s216
      %p218 = scmp.eq.s32.totalorder %s35, 0
      %p219 = por %p217, %p218
      %s221 = sadd.s32 %s220, 1
      %p224 = scmp.eq.s32.totalorder %s29, 1
      %p225 = scmp.ne.s32.totalorder %s220, %s222
      %p226 = scmp.eq.s32.totalorder %s29, 0
      %p227 = por %p225, %p226
      %p228 = scmp.ne.s32.totalorder %s220, %s222
      %p229 = scmp.eq.s32.totalorder %s34, 1
      %p230 = por %p228, %p229
      %p231 = scmp.ne.s32.totalorder %s222, %s223
      %p232 = scmp.eq.s32.totalorder %s34, 0
      %p233 = por %p231, %p232
      %p234 = scmp.ne.s32.totalorder %s222, %s223
      %p235 = scmp.eq.s32.totalorder %s35, 1
      %p236 = por %p234, %p235
      %p238 = scmp.ne.s32.totalorder %s223, %s237
      %p239 = scmp.eq.s32.totalorder %s35, 0
      %p240 = por %p238, %p239
      %s242 = sadd.s32 %s241, 1
      %p245 = scmp.eq.s32.totalorder %s29, 1
      %p246 = scmp.ne.s32.totalorder %s241, %s243
      %p247 = scmp.eq.s32.totalorder %s29, 0
      %p248 = por %p246, %p247
      %p249 = scmp.ne.s32.totalorder %s241, %s243
      %p250 = scmp.eq.s32.totalorder %s34, 1
      %p251 = por %p249, %p250
      %p252 = scmp.ne.s32.totalorder %s243, %s244
      %p253 = scmp.eq.s32.totalorder %s34, 0
      %p254 = por %p252, %p253
      %p255 = scmp.ne.s32.totalorder %s243, %s244
      %p256 = scmp.eq.s32.totalorder %s35, 1
      %p257 = por %p255, %p256
      %p259 = scmp.ne.s32.totalorder %s244, %s258
      %p260 = scmp.eq.s32.totalorder %s35, 0
      %p261 = por %p259, %p260
      %s263 = sadd.s32 %s262, 1
      %p266 = scmp.eq.s32.totalorder %s29, 1
      %p267 = scmp.ne.s32.totalorder %s262, %s264
      %p268 = scmp.eq.s32.totalorder %s29, 0
      %p269 = por %p267, %p268
      %p270 = scmp.ne.s32.totalorder %s262, %s264
      %p271 = scmp.eq.s32.totalorder %s34, 1
      %p272 = por %p270, %p271
      %p273 = scmp.ne.s32.totalorder %s264, %s265
      %p274 = scmp.eq.s32.totalorder %s34, 0
      %p275 = por %p273, %p274
      %p276 = scmp.ne.s32.totalorder %s264, %s265
      %p277 = scmp.eq.s32.totalorder %s35, 1
      %p278 = por %p276, %p277
      %p280 = scmp.ne.s32.totalorder %s265, %s279
      %p281 = scmp.eq.s32.totalorder %s35, 0
      %p282 = por %p280, %p281
      %s283 = ssub.s32 %s29, %s36
      %p284 = scmp.eq.s32.totalorder %s283, 0
      %s286 = sadd.s32 %s285, 1
      %s287 = scalar_select %p284, %s285, %s286
      %p290 = pneg %p284
      %p291 = scmp.eq.s32.totalorder %s29, 1
      %p292 = por %p290, %p291
      %p293 = scmp.ne.s32.totalorder %s285, %s288
      %p294 = scmp.eq.s32.totalorder %s29, 0
      %p295 = por %p293, %p294
      %p296 = scmp.ne.s32.totalorder %s285, %s288
      %p297 = scmp.eq.s32.totalorder %s34, 1
      %p298 = por %p296, %p297
      %p299 = scmp.ne.s32.totalorder %s288, %s289
      %p300 = scmp.eq.s32.totalorder %s34, 0
      %p301 = por %p299, %p300
      %p302 = scmp.ne.s32.totalorder %s288, %s289
      %p303 = scmp.eq.s32.totalorder %s35, 1
      %p304 = por %p302, %p303
      %p306 = scmp.ne.s32.totalorder %s289, %s305
      %p307 = scmp.eq.s32.totalorder %s35, 0
      %p308 = por %p306, %p307
      %s309 = ssub.s32 %s29, %s36
      %p310 = scmp.eq.s32.totalorder %s309, 0
      %s312 = sadd.s32 %s311, 1
      %s313 = scalar_select %p310, %s311, %s312
      %p316 = pneg %p310
      %p317 = scmp.eq.s32.totalorder %s29, 1
      %p318 = por %p316, %p317
      %p319 = scmp.ne.s32.totalorder %s311, %s314
      %p320 = scmp.eq.s32.totalorder %s29, 0
      %p321 = por %p319, %p320
      %p322 = scmp.ne.s32.totalorder %s311, %s314
      %p323 = scmp.eq.s32.totalorder %s34, 1
      %p324 = por %p322, %p323
      %p325 = scmp.ne.s32.totalorder %s314, %s315
      %p326 = scmp.eq.s32.totalorder %s34, 0
      %p327 = por %p325, %p326
      %p328 = scmp.ne.s32.totalorder %s314, %s315
      %p329 = scmp.eq.s32.totalorder %s35, 1
      %p330 = por %p328, %p329
      %p332 = scmp.ne.s32.totalorder %s315, %s331
      %p333 = scmp.eq.s32.totalorder %s35, 0
      %p334 = por %p332, %p333
      %p335 = scmp.le.s32.totalorder 1, %s29
      %p336 = scmp.lt.s32.totalorder %s29, 3
      %p337 = pnand %p335, %p336
      %p338 = pneg %p337
      // Predicated region
      $region9: #{mha_forward.1} parent=5 // pred_check
        _
      $region10: #{mha_forward.1} parent=5 // pred_check_branch
        %340 = sbr.rel (%p337) target = $region12
      $region11: #{mha_forward.1} parent=5 // pred_region
        %s341 = ssub.s32 %s29, 1
        // Predicated region
        $region13: #{mha_forward.1} parent=11 // pred_check
          %p342 = pneg %p128
        $region14: #{mha_forward.1} parent=11 // pred_check_branch
          %344 = sbr.rel (%p342) target = $region16
        $region15: #{mha_forward.1} parent=11 // pred_region
          _
        $region16: #{mha_forward.1} parent=11 // pred_fallthru
          _
        // Predicated region
        $region17: #{mha_forward.1} parent=11 // pred_check
          %p345 = pneg %p149
        $region18: #{mha_forward.1} parent=11 // pred_check_branch
          %347 = sbr.rel (%p345) target = $region20
        $region19: #{mha_forward.1} parent=11 // pred_region
          _
        $region20: #{mha_forward.1} parent=11 // pred_fallthru
          _
        // Predicated region
        $region21: #{mha_forward.1} parent=11 // pred_check
          %p348 = pneg %p170
        $region22: #{mha_forward.1} parent=11 // pred_check_branch
          %350 = sbr.rel (%p348) target = $region24
        $region23: #{mha_forward.1} parent=11 // pred_region
          _
        $region24: #{mha_forward.1} parent=11 // pred_fallthru
          _
        // Predicated region
        $region25: #{mha_forward.1} parent=11 // pred_check
          %p351 = pneg %p191
        $region26: #{mha_forward.1} parent=11 // pred_check_branch
          %353 = sbr.rel (%p351) target = $region28
        $region27: #{mha_forward.1} parent=11 // pred_region
          %355 = vsyncadd [#allocation6], 0
          %s357 = sshll.u32 %s6, 4
          %s358 = int_to_ptr.hbm [resolvable:$true] %s357
          %s359 = sshll.u32 [#allocation7], 4
          %s360 = int_to_ptr.vmem [resolvable:$true] %s359
          %362 = dma.hbm_to_vmem [thread:$0]  %s358, 16, %s360, [#allocation6]
        $region28: #{mha_forward.1} parent=11 // pred_fallthru
          _
        // Predicated region
        $region29: #{mha_forward.1} parent=11 // pred_check
          %p363 = pneg %p212
        $region30: #{mha_forward.1} parent=11 // pred_check_branch
          %365 = sbr.rel (%p363) target = $region32
        $region31: #{mha_forward.1} parent=11 // pred_region
          %367 = vsyncadd [#allocation9], 0
          %s368 = sshll.u32 %s7, 4
          %s369 = int_to_ptr.hbm [resolvable:$true] %s368
          %s370 = sshll.u32 [#allocation8], 4
          %s371 = int_to_ptr.vmem [resolvable:$true] %s370
          %376 = dma.hbm_to_vmem [thread:$0]  %s369, 512, %s371, [#allocation9], 128, 128, 8
        $region32: #{mha_forward.1} parent=11 // pred_fallthru
          _
        // Predicated region
        $region33: #{mha_forward.1} parent=11 // pred_check
          %p377 = pneg %p233
        $region34: #{mha_forward.1} parent=11 // pred_check_branch
          %379 = sbr.rel (%p377) target = $region36
        $region35: #{mha_forward.1} parent=11 // pred_region
          _
        $region36: #{mha_forward.1} parent=11 // pred_fallthru
          _
        // Predicated region
        $region37: #{mha_forward.1} parent=11 // pred_check
          %p380 = pneg %p254
        $region38: #{mha_forward.1} parent=11 // pred_check_branch
          %382 = sbr.rel (%p380) target = $region40
        $region39: #{mha_forward.1} parent=11 // pred_region
          _
        $region40: #{mha_forward.1} parent=11 // pred_fallthru
          _
        // Predicated region
        $region41: #{mha_forward.1} parent=11 // pred_check
          %p383 = pneg %p275
        $region42: #{mha_forward.1} parent=11 // pred_check_branch
          %385 = sbr.rel (%p383) target = $region44
        $region43: #{mha_forward.1} parent=11 // pred_region
          _
        $region44: #{mha_forward.1} parent=11 // pred_fallthru
          _
      $region12: #{mha_forward.1} parent=5 // pred_fallthru
        _
      %p386 = scmp.lt.s32.totalorder %s29, 2
      // Predicated region
      $region45: #{mha_forward.1} parent=5 // pred_check
        %p387 = pneg %p386
      $region46: #{mha_forward.1} parent=5 // pred_check_branch
        %389 = sbr.rel (%p387) target = $region48
      $region47: #{mha_forward.1} parent=5 // pred_region
        // Predicated region
        $region49: #{mha_forward.1} parent=47 // pred_check
          %p390 = pneg %p49
        $region50: #{mha_forward.1} parent=47 // pred_check_branch
          %392 = sbr.rel (%p390) target = $region52
        $region51: #{mha_forward.1} parent=47 // pred_region
          %p393 = scmp.lt.s32.totalorder %s29, 1
          %s394 = scalar_select %p393, %s29, 1
          %s395 = smul.addr %s394, 8
          %s396 = scalar_lea.vmem %s0, %s395
        $region52: #{mha_forward.1} parent=47 // pred_fallthru
          _
        // Predicated region
        $region53: #{mha_forward.1} parent=47 // pred_check
          %p397 = pneg %p75
        $region54: #{mha_forward.1} parent=47 // pred_check_branch
          %399 = sbr.rel (%p397) target = $region56
        $region55: #{mha_forward.1} parent=47 // pred_region
          %s400 = sand.u32 %s65, 1
          %s401 = scalar_lea.sflag [#allocation3], %s400
          %s402 = sand.u32 %s65, 1
          %s403 = smul.addr %s402, 64
          %s404 = scalar_lea.vmem [#allocation2], %s403
          %s405 = smul.u32 8, %s29
          %407 = vsyncadd %s401, 0
          %s408 = smul.addr %s405, 8
          %s409 = scalar_lea.hbm %s1, %s408
          %s410 = sshll.u32 %s409, 4
          %s411 = int_to_ptr.hbm [resolvable:$true] %s410
          %s412 = sshll.u32 %s404, 4
          %s413 = int_to_ptr.vmem [resolvable:$true] %s412
          %418 = dma.hbm_to_vmem [thread:$0]  %s411, 1024, %s413, %s401, 128, 128, 8
        $region56: #{mha_forward.1} parent=47 // pred_fallthru
          _
        // Predicated region
        $region57: #{mha_forward.1} parent=47 // pred_check
          %p419 = pneg %p101
        $region58: #{mha_forward.1} parent=47 // pred_check_branch
          %421 = sbr.rel (%p419) target = $region60
        $region59: #{mha_forward.1} parent=47 // pred_region
          %s422 = sand.u32 %s29, 1
          %s423 = scalar_lea.sflag [#allocation6], %s422
          %s424 = sand.u32 %s91, 1
          %s425 = smul.addr %s424, 64
          %s426 = scalar_lea.vmem [#allocation5], %s425
          %s427 = smul.u32 8, %s29
          %429 = vsyncadd %s423, 0
          %s430 = smul.addr %s427, 8
          %s431 = scalar_lea.hbm %s2, %s430
          %s432 = sshll.u32 %s431, 4
          %s433 = int_to_ptr.hbm [resolvable:$true] %s432
          %s434 = sshll.u32 %s426, 4
          %s435 = int_to_ptr.vmem [resolvable:$true] %s434
          %440 = dma.hbm_to_vmem [thread:$0]  %s433, 1024, %s435, %s423, 128, 128, 8
        $region60: #{mha_forward.1} parent=47 // pred_fallthru
          _
      $region48: #{mha_forward.1} parent=5 // pred_fallthru
        _
      %p441 = scmp.le.s32.totalorder 1, %s29
      %p442 = scmp.lt.s32.totalorder %s29, 3
      %p443 = pnand %p441, %p442
      %p444 = pneg %p443
      // Predicated region
      $region61: #{mha_forward.1} parent=5 // pred_check
        _
      $region62: #{mha_forward.1} parent=5 // pred_check_branch
        %446 = sbr.rel (%p443) target = $region64
      $region63: #{mha_forward.1} parent=5 // pred_region
        %s447 = ssub.s32 %s29, 1
        %s448 = sand.u32 %s68, 1
        %s449 = scalar_lea.sflag [#allocation3], %s448
        %s450 = sand.u32 %s68, 1
        %s451 = smul.addr %s450, 64
        %s452 = scalar_lea.vmem [#allocation2], %s451
        // Predicated region
        $region65: #{mha_forward.1} parent=63 // pred_check
          %p453 = pneg %p81
        $region66: #{mha_forward.1} parent=63 // pred_check_branch
          %455 = sbr.rel (%p453) target = $region68
        $region67: #{mha_forward.1} parent=63 // pred_region
          %457 = dma.done %s449, 1024
        $region68: #{mha_forward.1} parent=63 // pred_fallthru
          _
        %s458 = sand.u32 %s34, 1
        %s459 = scalar_lea.sflag [#allocation6], %s458
        %s460 = sand.u32 %s94, 1
        %s461 = smul.addr %s460, 64
        %s462 = scalar_lea.vmem [#allocation5], %s461
        // Predicated region
        $region69: #{mha_forward.1} parent=63 // pred_check
          %p463 = pneg %p107
        $region70: #{mha_forward.1} parent=63 // pred_check_branch
          %465 = sbr.rel (%p463) target = $region72
        $region71: #{mha_forward.1} parent=63 // pred_region
          %467 = dma.done %s459, 1024
        $region72: #{mha_forward.1} parent=63 // pred_fallthru
          _
        // Predicated region
        $region73: #{mha_forward.1} parent=63 // pred_check
          %p468 = pneg %p191
        $region74: #{mha_forward.1} parent=63 // pred_check_branch
          %470 = sbr.rel (%p468) target = $region76
        $region75: #{mha_forward.1} parent=63 // pred_region
          %472 = dma.done [#allocation6], 16
        $region76: #{mha_forward.1} parent=63 // pred_fallthru
          _
        // Predicated region
        $region77: #{mha_forward.1} parent=63 // pred_check
          %p473 = pneg %p212
        $region78: #{mha_forward.1} parent=63 // pred_check_branch
          %475 = sbr.rel (%p473) target = $region80
        $region79: #{mha_forward.1} parent=63 // pred_region
          %477 = dma.done [#allocation9], 512
        $region80: #{mha_forward.1} parent=63 // pred_fallthru
          _
        %p478 = scmp.lt.s32.totalorder %s34, 1
        %s479 = scalar_select %p478, %s34, 1
        %s480 = smul.addr %s479, 8
        %s481 = scalar_lea.vmem %s0, %s480
        %p482 = pneg %p55
        %p483 = pneg %p52
        %s484 = sand.u32 %s68, 1
        %s485 = scalar_lea.sflag [#allocation3], %s484
        %s486 = sand.u32 %s68, 1
        %s487 = smul.addr %s486, 64
        %s488 = scalar_lea.vmem [#allocation2], %s487
        %p489 = pneg %p81
        %p490 = pneg %p78
        %s491 = sand.u32 %s34, 1
        %s492 = scalar_lea.sflag [#allocation6], %s491
        %s493 = sand.u32 %s94, 1
        %s494 = smul.addr %s493, 64
        %s495 = scalar_lea.vmem [#allocation5], %s494
        %p496 = pneg %p107
        %p497 = pneg %p104
        %p498 = pneg %p128
        %p499 = pneg %p125
        %p500 = pneg %p149
        %p501 = pneg %p146
        %p502 = pneg %p170
        %p503 = pneg %p167
        %p504 = pneg %p191
        %p505 = pneg %p188
        %p506 = pneg %p212
        %p507 = pneg %p209
        %p508 = pneg %p233
        %p509 = pneg %p230
        %p510 = pneg %p254
        %p511 = pneg %p251
        %p512 = pneg %p275
        %p513 = pneg %p272
        %p514 = pneg %p301
        %p515 = pneg %p298
        %s516 = sand.u32 %s288, 1
        %s517 = scalar_lea.sflag [#allocation4], %s516
        %s518 = sand.u32 %s288, 1
        %s519 = smul.addr %s518, 8
        %s520 = scalar_lea.vmem [#allocation10], %s519
        %p521 = pneg %p327
        %p522 = pneg %p324
        %p523 = scmp.lt.s32.totalorder %s34, 1
        %s524 = scalar_select %p523, %s34, 1
        %s525 = smul.addr %s524, 8
        %s526 = scalar_lea.vmem %s12, %s525
        %p527 = scmp.lt.s32.totalorder %s34, 1
        %s528 = scalar_select %p527, %s34, 1
        %s529 = smul.addr %s528, 8
        %s530 = scalar_lea.vmem %s0, %s529
        %s531 = smul.u32 8, %s34
        %s532 = smul.u32 8, %s34
        %p533 = scmp.lt.s32.totalorder %s34, 1
        %s534 = scalar_select %p533, %s34, 1
        %s535 = smul.addr %s534, 8
        %s536 = scalar_lea.vmem %s12, %s535
        %v537 = vld [vmem:[%s530] sm:$0xff]
        %v538 = vld [vmem:[%s3] sm:$0xff]
        %v539 = vld [vmem:[%s3 + $0x8] sm:$0xff]
        %v540 = vld [vmem:[%s3 + $0x10] sm:$0xff]
        %v541 = vld [vmem:[%s3 + $0x18] sm:$0xff]
        %v542 = vld [vmem:[%s4] sm:$0x1]
        %v544 = vperm.slane %v542, 0
        %vm546 = vcmask 261120
        %v548 = vsel %vm546, %v537, 0
        %550 = vmatpush.msra.mxu0 0.0
        %551 = vmatpush.msra.mxu0 0.0
        %552 = vmatpush.msra.mxu0 0.0
        %553 = vmatpush.msra.mxu0 0.0
        %554 = vmatpush.msra.mxu0 0.0
        %555 = vmatpush.msra.mxu0 0.0
        %556 = vmatpush.msra.mxu0 0.0
        %557 = vmatpush.msra.mxu0 0.0
        %558 = vmatpush.msra.mxu0 0.0
        %559 = vmatpush.msra.mxu0 0.0
        %560 = vmatpush.msra.mxu0 0.0
        %561 = vmatpush.msra.mxu0 0.0
        %562 = vmatpush.msra.mxu0 %v541
        %563 = vmatpush.msra.mxu0 %v540
        %564 = vmatpush.msra.mxu0 %v539
        %565 = vmatpush.msra.mxu0 %v538
        %566 = vmatmul.f32.gmra.mxu0 %v548
        %v567 = vpop.f32.mrf.mxu0
        %v568 = vadd.f32 %v544, %v567
        %569 = vdwg.mxu0
        %v570 = vmul.f32 %v568, 0.35355338
        %v571 = vld [vmem:[%s452] sm:$0xff]
        %v572 = vld [vmem:[%s452 + $0x8] sm:$0xff]
        %v573 = vld [vmem:[%s452 + $0x10] sm:$0xff]
        %v574 = vld [vmem:[%s452 + $0x18] sm:$0xff]
        %v575 = vld [vmem:[%s452 + $0x20] sm:$0xff]
        %v576 = vld [vmem:[%s452 + $0x28] sm:$0xff]
        %v577 = vld [vmem:[%s452 + $0x30] sm:$0xff]
        %v578 = vld [vmem:[%s452 + $0x38] sm:$0xff]
        %v579 = vld [vmem:[%s5] sm:$0xff]
        %v580 = vld [vmem:[%s5 + $0x8] sm:$0xff]
        %v581 = vld [vmem:[%s5 + $0x10] sm:$0xff]
        %v582 = vld [vmem:[%s5 + $0x18] sm:$0xff]
        %v583 = vld [vmem:[#allocation7] sm:$0x1]
        %v585 = vperm.slane %v583, 0
        %v588 = vsel %vm546, %v571, 0
        %v591 = vsel %vm546, %v572, 0
        %v594 = vsel %vm546, %v573, 0
        %v597 = vsel %vm546, %v574, 0
        %v600 = vsel %vm546, %v575, 0
        %v603 = vsel %vm546, %v576, 0
        %v606 = vsel %vm546, %v577, 0
        %v609 = vsel %vm546, %v578, 0
        %611 = vmatpush.msra.mxu0 0.0
        %612 = vmatpush.msra.mxu0 0.0
        %613 = vmatpush.msra.mxu0 0.0
        %614 = vmatpush.msra.mxu0 0.0
        %615 = vmatpush.msra.mxu0 0.0
        %616 = vmatpush.msra.mxu0 0.0
        %617 = vmatpush.msra.mxu0 0.0
        %618 = vmatpush.msra.mxu0 0.0
        %619 = vmatpush.msra.mxu0 0.0
        %620 = vmatpush.msra.mxu0 0.0
        %621 = vmatpush.msra.mxu0 0.0
        %622 = vmatpush.msra.mxu0 0.0
        %623 = vmatpush.msra.mxu0 %v582
        %624 = vmatpush.msra.mxu0 %v581
        %625 = vmatpush.msra.mxu0 %v580
        %626 = vmatpush.msra.mxu0 %v579
        %627 = vmatmul.f32.gmra.mxu0 %v588
        %v628 = vpop.f32.mrf.mxu0
        %v629 = vadd.f32 %v585, %v628
        %630 = vmatmul.f32.gmra.mxu0 %v591
        %v631 = vpop.f32.mrf.mxu0
        %v632 = vadd.f32 %v585, %v631
        %633 = vmatmul.f32.gmra.mxu0 %v594
        %v634 = vpop.f32.mrf.mxu0
        %v635 = vadd.f32 %v585, %v634
        %636 = vmatmul.f32.gmra.mxu0 %v597
        %v637 = vpop.f32.mrf.mxu0
        %v638 = vadd.f32 %v585, %v637
        %639 = vmatmul.f32.gmra.mxu0 %v600
        %v640 = vpop.f32.mrf.mxu0
        %v641 = vadd.f32 %v585, %v640
        %642 = vmatmul.f32.gmra.mxu0 %v603
        %v643 = vpop.f32.mrf.mxu0
        %v644 = vadd.f32 %v585, %v643
        %645 = vmatmul.f32.gmra.mxu0 %v606
        %v646 = vpop.f32.mrf.mxu0
        %v647 = vadd.f32 %v585, %v646
        %648 = vmatmul.f32.gmra.mxu0 %v609
        %v649 = vpop.f32.mrf.mxu0
        %v650 = vadd.f32 %v585, %v649
        %651 = vdwg.mxu0
        %v652 = vld [vmem:[%s462] sm:$0xff]
        %v653 = vld [vmem:[%s462 + $0x8] sm:$0xff]
        %v654 = vld [vmem:[%s462 + $0x10] sm:$0xff]
        %v655 = vld [vmem:[%s462 + $0x18] sm:$0xff]
        %v656 = vld [vmem:[%s462 + $0x20] sm:$0xff]
        %v657 = vld [vmem:[%s462 + $0x28] sm:$0xff]
        %v658 = vld [vmem:[%s462 + $0x30] sm:$0xff]
        %v659 = vld [vmem:[%s462 + $0x38] sm:$0xff]
        %v660 = vld [vmem:[#allocation8] sm:$0xff]
        %v661 = vld [vmem:[#allocation8 + $0x8] sm:$0xff]
        %v662 = vld [vmem:[#allocation8 + $0x10] sm:$0xff]
        %v663 = vld [vmem:[#allocation8 + $0x18] sm:$0xff]
        %v664 = vld [vmem:[%s8] sm:$0x1]
        %v666 = vperm.slane %v664, 0
        %v669 = vsel %vm546, %v652, 0
        %v672 = vsel %vm546, %v653, 0
        %v675 = vsel %vm546, %v654, 0
        %v678 = vsel %vm546, %v655, 0
        %v681 = vsel %vm546, %v656, 0
        %v684 = vsel %vm546, %v657, 0
        %v687 = vsel %vm546, %v658, 0
        %v690 = vsel %vm546, %v659, 0
        %692 = vmatpush.msra.mxu0 0.0
        %693 = vmatpush.msra.mxu0 0.0
        %694 = vmatpush.msra.mxu0 0.0
        %695 = vmatpush.msra.mxu0 0.0
        %696 = vmatpush.msra.mxu0 0.0
        %697 = vmatpush.msra.mxu0 0.0
        %698 = vmatpush.msra.mxu0 0.0
        %699 = vmatpush.msra.mxu0 0.0
        %700 = vmatpush.msra.mxu0 0.0
        %701 = vmatpush.msra.mxu0 0.0
        %702 = vmatpush.msra.mxu0 0.0
        %703 = vmatpush.msra.mxu0 0.0
        %704 = vmatpush.msra.mxu0 %v663
        %705 = vmatpush.msra.mxu0 %v662
        %706 = vmatpush.msra.mxu0 %v661
        %707 = vmatpush.msra.mxu0 %v660
        %708 = vmatmul.f32.gmra.mxu0 %v669
        %v709 = vpop.f32.mrf.mxu0
        %v710 = vadd.f32 %v666, %v709
        %711 = vmatmul.f32.gmra.mxu0 %v672
        %v712 = vpop.f32.mrf.mxu0
        %v713 = vadd.f32 %v666, %v712
        %714 = vmatmul.f32.gmra.mxu0 %v675
        %v715 = vpop.f32.mrf.mxu0
        %v716 = vadd.f32 %v666, %v715
        %717 = vmatmul.f32.gmra.mxu0 %v678
        %v718 = vpop.f32.mrf.mxu0
        %v719 = vadd.f32 %v666, %v718
        %720 = vmatmul.f32.gmra.mxu0 %v681
        %v721 = vpop.f32.mrf.mxu0
        %v722 = vadd.f32 %v666, %v721
        %723 = vmatmul.f32.gmra.mxu0 %v684
        %v724 = vpop.f32.mrf.mxu0
        %v725 = vadd.f32 %v666, %v724
        %726 = vmatmul.f32.gmra.mxu0 %v687
        %v727 = vpop.f32.mrf.mxu0
        %v728 = vadd.f32 %v666, %v727
        %729 = vmatmul.f32.gmra.mxu0 %v690
        %v730 = vpop.f32.mrf.mxu0
        %v731 = vadd.f32 %v666, %v730
        %732 = vdwg.mxu0
        %v734 = vrot.slane %v570, 1
        %v735 = vrot.slane %v570, 2
        %v736 = vrot.slane %v570, 3
        %v737 = vrot.slane %v570, 4
        %v738 = vrot.slane %v570, 5
        %v739 = vrot.slane %v570, 6
        %v740 = vrot.slane %v570, 7
        %v741 = vperm.slane %v570, 0
        %v742 = vperm.slane %v734, 0
        %v743 = vperm.slane %v735, 0
        %v744 = vperm.slane %v736, 0
        %v745 = vperm.slane %v737, 0
        %v746 = vperm.slane %v738, 0
        %v747 = vperm.slane %v739, 0
        %v748 = vperm.slane %v740, 0
        %v757 = vmul.f32 %v741, %v629
        %v758 = vmul.f32 %v742, %v632
        %v759 = vmul.f32 %v743, %v635
        %v760 = vmul.f32 %v744, %v638
        %v761 = vmul.f32 %v745, %v641
        %v762 = vmul.f32 %v746, %v644
        %v763 = vmul.f32 %v747, %v647
        %v764 = vmul.f32 %v748, %v650
        %v765 = vld [vmem:[%s9] sm:$0xff]
        %v766 = vld [vmem:[%s9 + $0x8] sm:$0xff]
        %v767 = vld [vmem:[%s9 + $0x10] sm:$0xff]
        %v768 = vld [vmem:[%s9 + $0x18] sm:$0xff]
        %v770 = vsel %vm546, %v757, 0
        %v773 = vsel %vm546, %v758, 0
        %v776 = vsel %vm546, %v759, 0
        %v779 = vsel %vm546, %v760, 0
        %v782 = vsel %vm546, %v761, 0
        %v785 = vsel %vm546, %v762, 0
        %v788 = vsel %vm546, %v763, 0
        %v791 = vsel %vm546, %v764, 0
        %793 = vmatpush.msra.mxu0 0.0
        %794 = vmatpush.msra.mxu0 0.0
        %795 = vmatpush.msra.mxu0 0.0
        %796 = vmatpush.msra.mxu0 0.0
        %797 = vmatpush.msra.mxu0 0.0
        %798 = vmatpush.msra.mxu0 0.0
        %799 = vmatpush.msra.mxu0 0.0
        %800 = vmatpush.msra.mxu0 0.0
        %801 = vmatpush.msra.mxu0 0.0
        %802 = vmatpush.msra.mxu0 0.0
        %803 = vmatpush.msra.mxu0 0.0
        %804 = vmatpush.msra.mxu0 0.0
        %805 = vmatpush.msra.mxu0 %v768
        %806 = vmatpush.msra.mxu0 %v767
        %807 = vmatpush.msra.mxu0 %v766
        %808 = vmatpush.msra.mxu0 %v765
        %809 = vmatmul.f32.gmra.mxu0 %v770
        %v810 = vpop.f32.mrf.mxu0
        %v811 = vadd.f32 0.0, %v810
        %812 = vmatmul.f32.gmra.mxu0 %v773
        %v813 = vpop.f32.mrf.mxu0
        %v814 = vadd.f32 0.0, %v813
        %815 = vmatmul.f32.gmra.mxu0 %v776
        %v816 = vpop.f32.mrf.mxu0
        %v817 = vadd.f32 0.0, %v816
        %818 = vmatmul.f32.gmra.mxu0 %v779
        %v819 = vpop.f32.mrf.mxu0
        %v820 = vadd.f32 0.0, %v819
        %821 = vmatmul.f32.gmra.mxu0 %v782
        %v822 = vpop.f32.mrf.mxu0
        %v823 = vadd.f32 0.0, %v822
        %824 = vmatmul.f32.gmra.mxu0 %v785
        %v825 = vpop.f32.mrf.mxu0
        %v826 = vadd.f32 0.0, %v825
        %827 = vmatmul.f32.gmra.mxu0 %v788
        %v828 = vpop.f32.mrf.mxu0
        %v829 = vadd.f32 0.0, %v828
        %830 = vmatmul.f32.gmra.mxu0 %v791
        %v831 = vpop.f32.mrf.mxu0
        %v832 = vadd.f32 0.0, %v831
        %833 = vdwg.mxu0
        %vm834 = vcmask 31744
        %v835 = vsel %vm834, %v811, -inf
        %v836 = vrot.slane %v835, 4
        %v837 = vmax.f32 %v835, %v836
        %v838 = vrot.slane %v837, 2
        %v839 = vmax.f32 %v837, %v838
        %v840 = vrot.slane %v839, 1
        %v841 = vmax.f32 %v839, %v840
        %v842 = vsel %vm834, %v814, -inf
        %v843 = vrot.slane %v842, 4
        %v844 = vmax.f32 %v842, %v843
        %v845 = vrot.slane %v844, 2
        %v846 = vmax.f32 %v844, %v845
        %v847 = vrot.slane %v846, 1
        %v848 = vmax.f32 %v846, %v847
        %v849 = vsel %vm834, %v817, -inf
        %v850 = vrot.slane %v849, 4
        %v851 = vmax.f32 %v849, %v850
        %v852 = vrot.slane %v851, 2
        %v853 = vmax.f32 %v851, %v852
        %v854 = vrot.slane %v853, 1
        %v855 = vmax.f32 %v853, %v854
        %v856 = vsel %vm834, %v820, -inf
        %v857 = vrot.slane %v856, 4
        %v858 = vmax.f32 %v856, %v857
        %v859 = vrot.slane %v858, 2
        %v860 = vmax.f32 %v858, %v859
        %v861 = vrot.slane %v860, 1
        %v862 = vmax.f32 %v860, %v861
        %v863 = vsel %vm834, %v823, -inf
        %v864 = vrot.slane %v863, 4
        %v865 = vmax.f32 %v863, %v864
        %v866 = vrot.slane %v865, 2
        %v867 = vmax.f32 %v865, %v866
        %v868 = vrot.slane %v867, 1
        %v869 = vmax.f32 %v867, %v868
        %v870 = vsel %vm834, %v826, -inf
        %v871 = vrot.slane %v870, 4
        %v872 = vmax.f32 %v870, %v871
        %v873 = vrot.slane %v872, 2
        %v874 = vmax.f32 %v872, %v873
        %v875 = vrot.slane %v874, 1
        %v876 = vmax.f32 %v874, %v875
        %v877 = vsel %vm834, %v829, -inf
        %v878 = vrot.slane %v877, 4
        %v879 = vmax.f32 %v877, %v878
        %v880 = vrot.slane %v879, 2
        %v881 = vmax.f32 %v879, %v880
        %v882 = vrot.slane %v881, 1
        %v883 = vmax.f32 %v881, %v882
        %v884 = vsel %vm834, %v832, -inf
        %v885 = vrot.slane %v884, 4
        %v886 = vmax.f32 %v884, %v885
        %v887 = vrot.slane %v886, 2
        %v888 = vmax.f32 %v886, %v887
        %v889 = vrot.slane %v888, 1
        %v890 = vmax.f32 %v888, %v889
        %v891 = vsub.f32 %v811, %v841
        %v892 = vsub.f32 %v814, %v848
        %v893 = vsub.f32 %v817, %v855
        %v894 = vsub.f32 %v820, %v862
        %v895 = vsub.f32 %v823, %v869
        %v896 = vsub.f32 %v826, %v876
        %v897 = vsub.f32 %v829, %v883
        %v898 = vsub.f32 %v832, %v890
        %v899 = vmul.f32 %v891, 1.442695
        %v900 = vpow.pop %v899
        %v901 = vmul.f32 %v892, 1.442695
        %v902 = vpow.pop %v901
        %v903 = vmul.f32 %v893, 1.442695
        %v904 = vpow.pop %v903
        %v905 = vmul.f32 %v894, 1.442695
        %v906 = vpow.pop %v905
        %v907 = vmul.f32 %v895, 1.442695
        %v908 = vpow.pop %v907
        %v909 = vmul.f32 %v896, 1.442695
        %v910 = vpow.pop %v909
        %v911 = vmul.f32 %v897, 1.442695
        %v912 = vpow.pop %v911
        %v913 = vmul.f32 %v898, 1.442695
        %v914 = vpow.pop %v913
        %v915 = vsel %vm834, %v900, 0.0
        %v916 = vrot.slane %v915, 4
        %v917 = vadd.f32 %v915, %v916
        %v918 = vrot.slane %v917, 2
        %v919 = vadd.f32 %v917, %v918
        %v920 = vrot.slane %v919, 1
        %v921 = vadd.f32 %v919, %v920
        %v922 = vsel %vm834, %v902, 0.0
        %v923 = vrot.slane %v922, 4
        %v924 = vadd.f32 %v922, %v923
        %v925 = vrot.slane %v924, 2
        %v926 = vadd.f32 %v924, %v925
        %v927 = vrot.slane %v926, 1
        %v928 = vadd.f32 %v926, %v927
        %v929 = vsel %vm834, %v904, 0.0
        %v930 = vrot.slane %v929, 4
        %v931 = vadd.f32 %v929, %v930
        %v932 = vrot.slane %v931, 2
        %v933 = vadd.f32 %v931, %v932
        %v934 = vrot.slane %v933, 1
        %v935 = vadd.f32 %v933, %v934
        %v936 = vsel %vm834, %v906, 0.0
        %v937 = vrot.slane %v936, 4
        %v938 = vadd.f32 %v936, %v937
        %v939 = vrot.slane %v938, 2
        %v940 = vadd.f32 %v938, %v939
        %v941 = vrot.slane %v940, 1
        %v942 = vadd.f32 %v940, %v941
        %v943 = vsel %vm834, %v908, 0.0
        %v944 = vrot.slane %v943, 4
        %v945 = vadd.f32 %v943, %v944
        %v946 = vrot.slane %v945, 2
        %v947 = vadd.f32 %v945, %v946
        %v948 = vrot.slane %v947, 1
        %v949 = vadd.f32 %v947, %v948
        %v950 = vsel %vm834, %v910, 0.0
        %v951 = vrot.slane %v950, 4
        %v952 = vadd.f32 %v950, %v951
        %v953 = vrot.slane %v952, 2
        %v954 = vadd.f32 %v952, %v953
        %v955 = vrot.slane %v954, 1
        %v956 = vadd.f32 %v954, %v955
        %v957 = vsel %vm834, %v912, 0.0
        %v958 = vrot.slane %v957, 4
        %v959 = vadd.f32 %v957, %v958
        %v960 = vrot.slane %v959, 2
        %v961 = vadd.f32 %v959, %v960
        %v962 = vrot.slane %v961, 1
        %v963 = vadd.f32 %v961, %v962
        %v964 = vsel %vm834, %v914, 0.0
        %v965 = vrot.slane %v964, 4
        %v966 = vadd.f32 %v964, %v965
        %v967 = vrot.slane %v966, 2
        %v968 = vadd.f32 %v966, %v967
        %v969 = vrot.slane %v968, 1
        %v970 = vadd.f32 %v968, %v969
        %v971 = vrcp.pop %v921
        %v972 = vmul.f32 %v921, %v971
        %v973 = vsub.f32 1.0, %v972
        %v974 = vmul.f32 %v971, %v973
        %v975 = vadd.f32 %v971, %v974
        %vm976 = vweird.f32 %v921
        %vm977 = vweird.f32 %v971
        %vm978 = vmor %vm976, %vm977
        %v979 = vsel %vm978, %v971, %v975
        %v980 = vand.u32 2147483647, %v921
        %vm981 = vcmp.eq.f32.partialorder %v980, 8.507059e+37
        %v982 = vand.u32 %v921, 2147483648
        %v983 = vor.u32 1.1754944e-38, %v982
        %v984 = vsel %vm981, %v983, %v979
        %v985 = vrcp.pop %v928
        %v986 = vmul.f32 %v928, %v985
        %v987 = vsub.f32 1.0, %v986
        %v988 = vmul.f32 %v985, %v987
        %v989 = vadd.f32 %v985, %v988
        %vm990 = vweird.f32 %v928
        %vm991 = vweird.f32 %v985
        %vm992 = vmor %vm990, %vm991
        %v993 = vsel %vm992, %v985, %v989
        %v994 = vand.u32 2147483647, %v928
        %vm995 = vcmp.eq.f32.partialorder %v994, 8.507059e+37
        %v996 = vand.u32 %v928, 2147483648
        %v997 = vor.u32 1.1754944e-38, %v996
        %v998 = vsel %vm995, %v997, %v993
        %v999 = vrcp.pop %v935
        %v1000 = vmul.f32 %v935, %v999
        %v1001 = vsub.f32 1.0, %v1000
        %v1002 = vmul.f32 %v999, %v1001
        %v1003 = vadd.f32 %v999, %v1002
        %vm1004 = vweird.f32 %v935
        %vm1005 = vweird.f32 %v999
        %vm1006 = vmor %vm1004, %vm1005
        %v1007 = vsel %vm1006, %v999, %v1003
        %v1008 = vand.u32 2147483647, %v935
        %vm1009 = vcmp.eq.f32.partialorder %v1008, 8.507059e+37
        %v1010 = vand.u32 %v935, 2147483648
        %v1011 = vor.u32 1.1754944e-38, %v1010
        %v1012 = vsel %vm1009, %v1011, %v1007
        %v1013 = vrcp.pop %v942
        %v1014 = vmul.f32 %v942, %v1013
        %v1015 = vsub.f32 1.0, %v1014
        %v1016 = vmul.f32 %v1013, %v1015
        %v1017 = vadd.f32 %v1013, %v1016
        %vm1018 = vweird.f32 %v942
        %vm1019 = vweird.f32 %v1013
        %vm1020 = vmor %vm1018, %vm1019
        %v1021 = vsel %vm1020, %v1013, %v1017
        %v1022 = vand.u32 2147483647, %v942
        %vm1023 = vcmp.eq.f32.partialorder %v1022, 8.507059e+37
        %v1024 = vand.u32 %v942, 2147483648
        %v1025 = vor.u32 1.1754944e-38, %v1024
        %v1026 = vsel %vm1023, %v1025, %v1021
        %v1027 = vrcp.pop %v949
        %v1028 = vmul.f32 %v949, %v1027
        %v1029 = vsub.f32 1.0, %v1028
        %v1030 = vmul.f32 %v1027, %v1029
        %v1031 = vadd.f32 %v1027, %v1030
        %vm1032 = vweird.f32 %v949
        %vm1033 = vweird.f32 %v1027
        %vm1034 = vmor %vm1032, %vm1033
        %v1035 = vsel %vm1034, %v1027, %v1031
        %v1036 = vand.u32 2147483647, %v949
        %vm1037 = vcmp.eq.f32.partialorder %v1036, 8.507059e+37
        %v1038 = vand.u32 %v949, 2147483648
        %v1039 = vor.u32 1.1754944e-38, %v1038
        %v1040 = vsel %vm1037, %v1039, %v1035
        %v1041 = vrcp.pop %v956
        %v1042 = vmul.f32 %v956, %v1041
        %v1043 = vsub.f32 1.0, %v1042
        %v1044 = vmul.f32 %v1041, %v1043
        %v1045 = vadd.f32 %v1041, %v1044
        %vm1046 = vweird.f32 %v956
        %vm1047 = vweird.f32 %v1041
        %vm1048 = vmor %vm1046, %vm1047
        %v1049 = vsel %vm1048, %v1041, %v1045
        %v1050 = vand.u32 2147483647, %v956
        %vm1051 = vcmp.eq.f32.partialorder %v1050, 8.507059e+37
        %v1052 = vand.u32 %v956, 2147483648
        %v1053 = vor.u32 1.1754944e-38, %v1052
        %v1054 = vsel %vm1051, %v1053, %v1049
        %v1055 = vrcp.pop %v963
        %v1056 = vmul.f32 %v963, %v1055
        %v1057 = vsub.f32 1.0, %v1056
        %v1058 = vmul.f32 %v1055, %v1057
        %v1059 = vadd.f32 %v1055, %v1058
        %vm1060 = vweird.f32 %v963
        %vm1061 = vweird.f32 %v1055
        %vm1062 = vmor %vm1060, %vm1061
        %v1063 = vsel %vm1062, %v1055, %v1059
        %v1064 = vand.u32 2147483647, %v963
        %vm1065 = vcmp.eq.f32.partialorder %v1064, 8.507059e+37
        %v1066 = vand.u32 %v963, 2147483648
        %v1067 = vor.u32 1.1754944e-38, %v1066
        %v1068 = vsel %vm1065, %v1067, %v1063
        %v1069 = vrcp.pop %v970
        %v1070 = vmul.f32 %v970, %v1069
        %v1071 = vsub.f32 1.0, %v1070
        %v1072 = vmul.f32 %v1069, %v1071
        %v1073 = vadd.f32 %v1069, %v1072
        %vm1074 = vweird.f32 %v970
        %vm1075 = vweird.f32 %v1069
        %vm1076 = vmor %vm1074, %vm1075
        %v1077 = vsel %vm1076, %v1069, %v1073
        %v1078 = vand.u32 2147483647, %v970
        %vm1079 = vcmp.eq.f32.partialorder %v1078, 8.507059e+37
        %v1080 = vand.u32 %v970, 2147483648
        %v1081 = vor.u32 1.1754944e-38, %v1080
        %v1082 = vsel %vm1079, %v1081, %v1077
        %v1083 = vmul.f32 %v900, %v984
        %v1084 = vmul.f32 %v902, %v998
        %v1085 = vmul.f32 %v904, %v1012
        %v1086 = vmul.f32 %v906, %v1026
        %v1087 = vmul.f32 %v908, %v1040
        %v1088 = vmul.f32 %v910, %v1054
        %v1089 = vmul.f32 %v912, %v1068
        %v1090 = vmul.f32 %v914, %v1082
        %v1091 = vld [vmem:[%s10] sm:$0xf]
        %v1093 = vsel %vm834, %v1083, 0
        %v1096 = vsel %vm834, %v1084, 0
        %v1099 = vsel %vm834, %v1085, 0
        %v1102 = vsel %vm834, %v1086, 0
        %v1105 = vsel %vm834, %v1087, 0
        %v1108 = vsel %vm834, %v1088, 0
        %v1111 = vsel %vm834, %v1089, 0
        %v1114 = vsel %vm834, %v1090, 0
        %vm1116 = vcmask 1043456
        %v1118 = vsel %vm1116, %v1091, 0
        %1120 = vmatpush.msra.mxu0 0.0
        %1121 = vmatpush.msra.mxu0 0.0
        %1122 = vmatpush.msra.mxu0 0.0
        %1123 = vmatpush.msra.mxu0 0.0
        %1124 = vmatpush.msra.mxu0 0.0
        %1125 = vmatpush.msra.mxu0 0.0
        %1126 = vmatpush.msra.mxu0 0.0
        %1127 = vmatpush.msra.mxu0 0.0
        %1128 = vmatpush.msra.mxu0 0.0
        %1129 = vmatpush.msra.mxu0 0.0
        %1130 = vmatpush.msra.mxu0 0.0
        %1131 = vmatpush.msra.mxu0 0.0
        %1132 = vmatpush.msra.mxu0 0.0
        %1133 = vmatpush.msra.mxu0 0.0
        %1134 = vmatpush.msra.mxu0 0.0
        %1135 = vmatpush.msra.mxu0 %v1118
        %1136 = vmatmul.f32.gmra.mxu0 %v1093
        %v1137 = vpop.f32.mrf.mxu0
        %v1138 = vadd.f32 0.0, %v1137
        %1139 = vmatmul.f32.gmra.mxu0 %v1096
        %v1140 = vpop.f32.mrf.mxu0
        %v1141 = vadd.f32 0.0, %v1140
        %1142 = vmatmul.f32.gmra.mxu0 %v1099
        %v1143 = vpop.f32.mrf.mxu0
        %v1144 = vadd.f32 0.0, %v1143
        %1145 = vmatmul.f32.gmra.mxu0 %v1102
        %v1146 = vpop.f32.mrf.mxu0
        %v1147 = vadd.f32 0.0, %v1146
        %1148 = vmatmul.f32.gmra.mxu0 %v1105
        %v1149 = vpop.f32.mrf.mxu0
        %v1150 = vadd.f32 0.0, %v1149
        %1151 = vmatmul.f32.gmra.mxu0 %v1108
        %v1152 = vpop.f32.mrf.mxu0
        %v1153 = vadd.f32 0.0, %v1152
        %1154 = vmatmul.f32.gmra.mxu0 %v1111
        %v1155 = vpop.f32.mrf.mxu0
        %v1156 = vadd.f32 0.0, %v1155
        %1157 = vmatmul.f32.gmra.mxu0 %v1114
        %v1158 = vpop.f32.mrf.mxu0
        %v1159 = vadd.f32 0.0, %v1158
        %1160 = vdwg.mxu0
        %v1161 = vmul.f32 %v1138, %v710
        %v1162 = vmul.f32 %v1141, %v713
        %v1163 = vmul.f32 %v1144, %v716
        %v1164 = vmul.f32 %v1147, %v719
        %v1165 = vmul.f32 %v1150, %v722
        %v1166 = vmul.f32 %v1153, %v725
        %v1167 = vmul.f32 %v1156, %v728
        %v1168 = vmul.f32 %v1159, %v731
        %v1169 = vsel %vm546, %v1161, 0.0
        %v1170 = vrot.slane %v1169, 4
        %v1171 = vadd.f32 %v1169, %v1170
        %v1172 = vrot.slane %v1171, 2
        %v1173 = vadd.f32 %v1171, %v1172
        %v1174 = vrot.slane %v1173, 1
        %v1175 = vadd.f32 %v1173, %v1174
        %v1176 = vsel %vm546, %v1162, 0.0
        %v1177 = vrot.slane %v1176, 4
        %v1178 = vadd.f32 %v1176, %v1177
        %v1179 = vrot.slane %v1178, 2
        %v1180 = vadd.f32 %v1178, %v1179
        %v1181 = vrot.slane %v1180, 1
        %v1182 = vadd.f32 %v1180, %v1181
        %v1183 = vsel %vm546, %v1163, 0.0
        %v1184 = vrot.slane %v1183, 4
        %v1185 = vadd.f32 %v1183, %v1184
        %v1186 = vrot.slane %v1185, 2
        %v1187 = vadd.f32 %v1185, %v1186
        %v1188 = vrot.slane %v1187, 1
        %v1189 = vadd.f32 %v1187, %v1188
        %v1190 = vsel %vm546, %v1164, 0.0
        %v1191 = vrot.slane %v1190, 4
        %v1192 = vadd.f32 %v1190, %v1191
        %v1193 = vrot.slane %v1192, 2
        %v1194 = vadd.f32 %v1192, %v1193
        %v1195 = vrot.slane %v1194, 1
        %v1196 = vadd.f32 %v1194, %v1195
        %v1197 = vsel %vm546, %v1165, 0.0
        %v1198 = vrot.slane %v1197, 4
        %v1199 = vadd.f32 %v1197, %v1198
        %v1200 = vrot.slane %v1199, 2
        %v1201 = vadd.f32 %v1199, %v1200
        %v1202 = vrot.slane %v1201, 1
        %v1203 = vadd.f32 %v1201, %v1202
        %v1204 = vsel %vm546, %v1166, 0.0
        %v1205 = vrot.slane %v1204, 4
        %v1206 = vadd.f32 %v1204, %v1205
        %v1207 = vrot.slane %v1206, 2
        %v1208 = vadd.f32 %v1206, %v1207
        %v1209 = vrot.slane %v1208, 1
        %v1210 = vadd.f32 %v1208, %v1209
        %v1211 = vsel %vm546, %v1167, 0.0
        %v1212 = vrot.slane %v1211, 4
        %v1213 = vadd.f32 %v1211, %v1212
        %v1214 = vrot.slane %v1213, 2
        %v1215 = vadd.f32 %v1213, %v1214
        %v1216 = vrot.slane %v1215, 1
        %v1217 = vadd.f32 %v1215, %v1216
        %v1218 = vsel %vm546, %v1168, 0.0
        %v1219 = vrot.slane %v1218, 4
        %v1220 = vadd.f32 %v1218, %v1219
        %v1221 = vrot.slane %v1220, 2
        %v1222 = vadd.f32 %v1220, %v1221
        %v1223 = vrot.slane %v1222, 1
        %v1224 = vadd.f32 %v1222, %v1223
        %vm1233 = vcmask 1041409
        %v1234 = vsel %vm1233, %v1182, %v1175
        %vm1235 = vcmask 1042434
        %v1236 = vsel %vm1235, %v1189, %v1234
        %vm1237 = vcmask 1043459
        %v1238 = vsel %vm1237, %v1196, %v1236
        %vm1239 = vcmask 1044484
        %v1240 = vsel %vm1239, %v1203, %v1238
        %vm1241 = vcmask 1045509
        %v1242 = vsel %vm1241, %v1210, %v1240
        %vm1243 = vcmask 1046534
        %v1244 = vsel %vm1243, %v1217, %v1242
        %vm1245 = vcmask 1047559
        %v1246 = vsel %vm1245, %v1224, %v1244
        %1248 = vst.msk [vmem:[%s520] sm:$0xff] %vm546, %v1246
        %v1249 = vsel %vm834, %v1083, 0.0
        %1250 = vadd.xlane.f32.xlu0 %v1249
        %v1251 = vpop.xlane.xlu0 %1250
        %v1252 = vsel %vm834, %v1084, 0.0
        %1253 = vadd.xlane.f32.xlu0 %v1252
        %v1254 = vpop.xlane.xlu0 %1253
        %v1255 = vsel %vm834, %v1085, 0.0
        %1256 = vadd.xlane.f32.xlu0 %v1255
        %v1257 = vpop.xlane.xlu0 %1256
        %v1258 = vsel %vm834, %v1086, 0.0
        %1259 = vadd.xlane.f32.xlu0 %v1258
        %v1260 = vpop.xlane.xlu0 %1259
        %v1261 = vsel %vm834, %v1087, 0.0
        %1262 = vadd.xlane.f32.xlu0 %v1261
        %v1263 = vpop.xlane.xlu0 %1262
        %v1264 = vsel %vm834, %v1088, 0.0
        %1265 = vadd.xlane.f32.xlu0 %v1264
        %v1266 = vpop.xlane.xlu0 %1265
        %v1267 = vsel %vm834, %v1089, 0.0
        %1268 = vadd.xlane.f32.xlu0 %v1267
        %v1269 = vpop.xlane.xlu0 %1268
        %v1270 = vsel %vm834, %v1090, 0.0
        %1271 = vadd.xlane.f32.xlu0 %v1270
        %v1272 = vpop.xlane.xlu0 %1271
        %v1273 = vmul.f32 %v1251, 0.25
        %v1274 = vmul.f32 %v1254, 0.25
        %v1275 = vmul.f32 %v1257, 0.25
        %v1276 = vmul.f32 %v1260, 0.25
        %v1277 = vmul.f32 %v1263, 0.25
        %v1278 = vmul.f32 %v1266, 0.25
        %v1279 = vmul.f32 %v1269, 0.25
        %v1280 = vmul.f32 %v1272, 0.25
        %v1289 = vlaneseq
        %v1290 = vand.u32 %v1289, 127
        %v1291 = vperm.slane %v1273, %v1290
        %v1292 = vperm.slane %v1274, %v1290
        %v1293 = vperm.slane %v1275, %v1290
        %v1294 = vperm.slane %v1276, %v1290
        %v1295 = vperm.slane %v1277, %v1290
        %v1296 = vperm.slane %v1278, %v1290
        %v1297 = vperm.slane %v1279, %v1290
        %v1298 = vperm.slane %v1280, %v1290
        %v1299 = vsel %vm1233, %v1292, %v1291
        %v1300 = vsel %vm1235, %v1293, %v1299
        %v1301 = vsel %vm1237, %v1294, %v1300
        %v1302 = vsel %vm1239, %v1295, %v1301
        %v1303 = vsel %vm1241, %v1296, %v1302
        %v1304 = vsel %vm1243, %v1297, %v1303
        %v1305 = vsel %vm1245, %v1298, %v1304
        %vm1307 = vcmask 64512
        %1308 = vst.msk [vmem:[%s536] sm:$0xff] %vm1307, %v1305
        %s1309 = sand.u32 %s288, 1
        %s1310 = scalar_lea.sflag [#allocation4], %s1309
        %s1311 = sand.u32 %s288, 1
        %s1312 = smul.addr %s1311, 8
        %s1313 = scalar_lea.vmem [#allocation10], %s1312
        %p1314 = scmp.lt.s32.totalorder %s34, 1
        %s1315 = scalar_select %p1314, %s34, 1
        %s1316 = smul.addr %s1315, 8
        %s1317 = scalar_lea.vmem %s12, %s1316
        // Predicated region
        $region81: #{mha_forward.1} parent=63 // pred_check
          %p1318 = pneg %p298
        $region82: #{mha_forward.1} parent=63 // pred_check_branch
          %1320 = sbr.rel (%p1318) target = $region84
        $region83: #{mha_forward.1} parent=63 // pred_region
          %1322 = vsyncadd %s1310, 0
          %s1323 = smul.addr %s34, 8
          %s1324 = scalar_lea.hbm %s11, %s1323
          %s1326 = sshll.u32 %s1313, 4
          %s1327 = int_to_ptr.vmem [resolvable:$true] %s1326
          %s1328 = sshll.u32 %s1324, 4
          %s1329 = int_to_ptr.hbm [resolvable:$true] %s1328
          %1331 = dma.vmem_to_hbm [thread:$0]  %s1327, 128, %s1329, %s1310
        $region84: #{mha_forward.1} parent=63 // pred_fallthru
          _
        // Predicated region
        $region85: #{mha_forward.1} parent=63 // pred_check
          %p1332 = pneg %p324
        $region86: #{mha_forward.1} parent=63 // pred_check_branch
          %1334 = sbr.rel (%p1332) target = $region88
        $region87: #{mha_forward.1} parent=63 // pred_region
          _
        $region88: #{mha_forward.1} parent=63 // pred_fallthru
          _
      $region64: #{mha_forward.1} parent=5 // pred_fallthru
        _
      %p1335 = scmp.le.s32.totalorder 2, %s29
      // Predicated region
      $region89: #{mha_forward.1} parent=5 // pred_check
        %p1336 = pneg %p1335
      $region90: #{mha_forward.1} parent=5 // pred_check_branch
        %1338 = sbr.rel (%p1336) target = $region92
      $region91: #{mha_forward.1} parent=5 // pred_region
        %s1339 = ssub.s32 %s29, 2
        // Predicated region
        $region93: #{mha_forward.1} parent=91 // pred_check
          %p1340 = pneg %p304
        $region94: #{mha_forward.1} parent=91 // pred_check_branch
          %1342 = sbr.rel (%p1340) target = $region96
        $region95: #{mha_forward.1} parent=91 // pred_region
          %s1343 = sand.u32 %s289, 1
          %s1344 = scalar_lea.sflag [#allocation4], %s1343
          %s1345 = sand.u32 %s289, 1
          %s1346 = smul.addr %s1345, 8
          %s1347 = scalar_lea.vmem [#allocation10], %s1346
          %1349 = dma.done %s1344, 128
        $region96: #{mha_forward.1} parent=91 // pred_fallthru
          _
        // Predicated region
        $region97: #{mha_forward.1} parent=91 // pred_check
          %p1350 = pneg %p330
        $region98: #{mha_forward.1} parent=91 // pred_check_branch
          %1352 = sbr.rel (%p1350) target = $region100
        $region99: #{mha_forward.1} parent=91 // pred_region
          %p1353 = scmp.lt.s32.totalorder %s35, 1
          %s1354 = scalar_select %p1353, %s35, 1
          %s1355 = smul.addr %s1354, 8
          %s1356 = scalar_lea.vmem %s12, %s1355
        $region100: #{mha_forward.1} parent=91 // pred_fallthru
          _
      $region92: #{mha_forward.1} parent=5 // pred_fallthru
        _
    $region6: #{mha_forward.1} parent=1 // loop_footer
      %s33 = sadd.s32 1, %s29
    $region7: #{mha_forward.1} parent=1 // loop_footer_branch
      %28 = sbr.rel target = $region3
    $region8: #{mha_forward.1} parent=1 // loop_exit
      _
    %1357 = vsyncpa [#allocation3], 1
    %s1358 = scalar_lea.sflag [#allocation3], 1
    %1359 = vsyncpa %s1358, 1
    %1360 = vsyncpa [#allocation6], 1
    %s1361 = scalar_lea.sflag [#allocation6], 1
    %1362 = vsyncpa %s1361, 1
    %1363 = vsyncpa [#allocation9], 1
    %1364 = vsyncpa [#allocation4], 1
    %s1365 = scalar_lea.sflag [#allocation4], 1
    %1366 = vsyncpa %s1365, 1

</llo_original>
